<compile_context>
chip_gen: v7x
topology: tpu7x:2x2x1
jax: 0.10.0
libtpu: 0.0.40
codegen_flags: <defaults>
</compile_context>

<pallas_src>
from functools import lru_cache

import jax
import jax.numpy as jnp
from jax import lax
from jax.experimental import pallas as pl
from jax.experimental.pallas import tpu as pltpu


# ---------------------------------------------------------------------------
# Pallas kernels
# ---------------------------------------------------------------------------
def _normalize_kernel(x_ref, m_ref, s_ref, o_ref):
    # (x - mean) * (1/std), per-row broadcast (row = one (n, c) image plane).
    o_ref[...] = (x_ref[...] - m_ref[...]) * s_ref[...]


def _make_matmul_kernel(relu, has_residual):
    """Tiled matmul with fused per-output-channel scale/bias (+residual, +relu)."""

    def kernel(*refs):
        if has_residual:
            x_ref, w_ref, s_ref, b_ref, r_ref, o_ref, acc_ref = refs
        else:
            x_ref, w_ref, s_ref, b_ref, o_ref, acc_ref = refs
            r_ref = None

        @pl.when(pl.program_id(2) == 0)
        def _init():
            acc_ref[...] = jnp.zeros_like(acc_ref)

        acc_ref[...] += jnp.dot(
            x_ref[...], w_ref[...], preferred_element_type=jnp.float32
        )

        @pl.when(pl.program_id(2) == pl.num_programs(2) - 1)
        def _finish():
            y = acc_ref[...] * s_ref[...] + b_ref[...]
            if has_residual:
                y = y + r_ref[...]
            if relu:
                y = jnp.maximum(y, 0.0)
            o_ref[...] = y.astype(o_ref.dtype)

    return kernel


# ---------------------------------------------------------------------------
# Pallas call builders / wrappers
# ---------------------------------------------------------------------------
def _round_up(x, m):
    return (x + m - 1) // m * m


def _pick_tk(kp):
    for t in (512, 256, 128):
        if kp % t == 0:
            return t
    return 128


@lru_cache(maxsize=None)
def _build_matmul(mp, kp, np_, tm, tn, tk, relu, has_residual):
    kernel = _make_matmul_kernel(relu, has_residual)
    grid = (mp // tm, np_ // tn, kp // tk)

    in_specs = [
        pl.BlockSpec((tm, tk), lambda i, j, k: (i, k)),
        pl.BlockSpec((tk, tn), lambda i, j, k: (k, j)),
        pl.BlockSpec((1, tn), lambda i, j, k: (0, j)),
        pl.BlockSpec((1, tn), lambda i, j, k: (0, j)),
    ]
    if has_residual:
        in_specs.append(pl.BlockSpec((tm, tn), lambda i, j, k: (i, j)))

    fn = pl.pallas_call(
        kernel,
        out_shape=jax.ShapeDtypeStruct((mp, np_), jnp.float32),
        grid=grid,
        in_specs=in_specs,
        out_specs=pl.BlockSpec((tm, tn), lambda i, j, k: (i, j)),
        scratch_shapes=[pltpu.VMEM((tm, tn), jnp.float32)],
        compiler_params=pltpu.CompilerParams(
            dimension_semantics=("parallel", "parallel", "arbitrary")
        ),
    )
    return jax.jit(fn)


def matmul_scale_bias(x, w, scale, bias, *, relu, residual=None):
    """(M,K)@(K,N) * scale + bias [+ residual] [-> relu], via Pallas MXU tiles."""
    m, k = x.shape
    _, n = w.shape
    tm, tn = 128, 128
    mp, np_ = _round_up(m, tm), _round_up(n, tn)
    kp = _round_up(k, 128)
    tk = _pick_tk(kp)

    xp = jnp.pad(x, ((0, mp - m), (0, kp - k)))
    wp = jnp.pad(w, ((0, kp - k), (0, np_ - n)))
    sp = jnp.pad(scale, (0, np_ - n)).reshape(1, np_)
    bp = jnp.pad(bias, (0, np_ - n)).reshape(1, np_)
    args = [xp, wp, sp, bp]
    if residual is not None:
        args.append(jnp.pad(residual, ((0, mp - m), (0, np_ - n))))

    fn = _build_matmul(mp, kp, np_, tm, tn, tk, bool(relu), residual is not None)
    out = fn(*args)
    return out[:m, :n]


def normalize_input(x, mean, std):
    """(x - mean) / std with per-channel stats, as a Pallas elementwise kernel."""
    n, c, h, w = x.shape
    rows, lanes = n * c, h * w
    x2 = x.reshape(rows, lanes)
    m = jnp.broadcast_to(mean.reshape(1, c), (n, c)).reshape(rows, 1)
    s = jnp.broadcast_to(1.0 / std.reshape(1, c), (n, c)).reshape(rows, 1)
    out = pl.pallas_call(
        _normalize_kernel,
        out_shape=jax.ShapeDtypeStruct((rows, lanes), x.dtype),
        grid=(1,),
        in_specs=[
            pl.BlockSpec((rows, lanes), lambda i: (0, 0)),
            pl.BlockSpec((rows, 1), lambda i: (0, 0)),
            pl.BlockSpec((rows, 1), lambda i: (0, 0)),
        ],
        out_specs=pl.BlockSpec((rows, lanes), lambda i: (0, 0)),
    )(x2, m, s)
    return out.reshape(n, c, h, w)


# ---------------------------------------------------------------------------
# Conv-as-matmul plumbing (layout only; all FLOPs run in the Pallas kernel)
# ---------------------------------------------------------------------------
def _im2col(x, kh, kw, stride, pad):
    """NCHW -> (N*Ho*Wo, C*kh*kw) patches, ordering matches OIHW weight flatten."""
    if pad:
        x = jnp.pad(x, ((0, 0), (0, 0), (pad, pad), (pad, pad)))
    n, c, hp, wp = x.shape
    ho = (hp - kh) // stride + 1
    wo = (wp - kw) // stride + 1
    cols = []
    for i in range(kh):
        for j in range(kw):
            cols.append(x[:, :, i:i + stride * ho:stride, j:j + stride * wo:stride])
    col = jnp.stack(cols, axis=-1)                       # (N, C, Ho, Wo, kh*kw)
    col = col.transpose(0, 2, 3, 1, 4).reshape(n * ho * wo, c * kh * kw)
    return col, ho, wo


def conv_bn(x, w, scale, bias, *, stride, pad, relu, residual=None):
    """conv2d (no bias) + folded BN scale/bias (+residual add) (+ReLU)."""
    n, c, _, _ = x.shape
    o, _, kh, kw = w.shape
    col, ho, wo = _im2col(x, kh, kw, stride, pad)        # (M, K)
    wm = w.reshape(o, c * kh * kw).T                     # (K, O)
    res2d = None
    if residual is not None:
        res2d = residual.transpose(0, 2, 3, 1).reshape(n * ho * wo, o)
    y2d = matmul_scale_bias(col, wm, scale, bias, relu=relu, residual=res2d)
    return y2d.reshape(n, ho, wo, o).transpose(0, 3, 1, 2)


def maxpool_3x3_s2_p1(x):
    # TODO(synk): max-pool is a pure windowed data-movement op; done via
    # lax.reduce_window rather than a dedicated Pallas kernel.
    return lax.reduce_window(
        x, -jnp.inf, lax.max,
        (1, 1, 3, 3), (1, 1, 2, 2),
        padding=((0, 0), (0, 0), (1, 1), (1, 1)),
    )


# ---------------------------------------------------------------------------
# ResNet-50 parameters (eval-mode BN folded to scale/bias) and forward
# ---------------------------------------------------------------------------
def _fold_bn(gamma, beta, mean, var, eps=1e-5):
    scale = gamma / jnp.sqrt(var + eps)
    return scale, beta - mean * scale


def _init_conv(key, o, c, kh, kw):
    fan_in = c * kh * kw
    return jax.random.normal(key, (o, c, kh, kw), jnp.float32) * (2.0 / fan_in) ** 0.5


def _init_bn(key, n):
    k1, k2, k3, k4 = jax.random.split(key, 4)
    gamma = 1.0 + 0.1 * jax.random.normal(k1, (n,), jnp.float32)
    beta = 0.1 * jax.random.normal(k2, (n,), jnp.float32)
    mean = 0.1 * jax.random.normal(k3, (n,), jnp.float32)
    var = 1.0 + 0.1 * jax.random.uniform(k4, (n,), jnp.float32)
    return _fold_bn(gamma, beta, mean, var)


def init_resnet50_params(key):
    keys = iter(jax.random.split(key, 256))
    params = {
        "conv1_w": _init_conv(next(keys), 64, 3, 7, 7),
        "bn1": _init_bn(next(keys), 64),
    }
    in_ch = 64
    for li, (width, nblocks, stride) in enumerate(
        [(64, 3, 1), (128, 4, 2), (256, 6, 2), (512, 3, 2)], start=1
    ):
        blocks = []
        for b in range(nblocks):
            s = stride if b == 0 else 1
            blk = {"stride": s}
            blk["conv1_w"] = _init_conv(next(keys), width, in_ch, 1, 1)
            blk["bn1"] = _init_bn(next(keys), width)
            blk["conv2_w"] = _init_conv(next(keys), width, width, 3, 3)
            blk["bn2"] = _init_bn(next(keys), width)
            blk["conv3_w"] = _init_conv(next(keys), width * 4, width, 1, 1)
            blk["bn3"] = _init_bn(next(keys), width * 4)
            if b == 0:
                blk["down_w"] = _init_conv(next(keys), width * 4, in_ch, 1, 1)
                blk["dbn"] = _init_bn(next(keys), width * 4)
            blocks.append(blk)
            in_ch = width * 4
        params[f"layer{li}"] = blocks
    return params


def bottleneck_forward(x, blk):
    s = blk["stride"]
    identity = x
    out = conv_bn(x, blk["conv1_w"], *blk["bn1"], stride=1, pad=0, relu=True)
    out = conv_bn(out, blk["conv2_w"], *blk["bn2"], stride=s, pad=1, relu=True)
    if "down_w" in blk:
        identity = conv_bn(x, blk["down_w"], *blk["dbn"], stride=s, pad=0, relu=False)
    # conv3 + bn3, residual add, then ReLU — fused in the matmul epilogue.
    out = conv_bn(out, blk["conv3_w"], *blk["bn3"], stride=1, pad=0, relu=True,
                  residual=identity)
    return out


class ResNet50FcJAX:
    """Mirror of ResNet50Fc: normalize -> ResNet-50 trunk -> (N, 2048) features."""

    def __init__(self, key, normalize=True):
        self.normalize = normalize
        self.mean = jnp.array([0.485, 0.456, 0.406], jnp.float32)
        self.std = jnp.array([0.229, 0.224, 0.225], jnp.float32)
        self.params = init_resnet50_params(key)
        self._in_features = 2048

    def forward(self, x):
        p = self.params
        if self.normalize:
            x = normalize_input(x, self.mean, self.std)
        x = conv_bn(x, p["conv1_w"], *p["bn1"], stride=2, pad=3, relu=True)
        x = maxpool_3x3_s2_p1(x)
        for li in range(1, 5):
            for blk in p[f"layer{li}"]:
                x = bottleneck_forward(x, blk)
        # TODO(synk): adaptive avg-pool(1,1) + flatten via jnp.mean (tiny reduction).
        return jnp.mean(x, axis=(2, 3))  # (N, 2048)

    def output_num(self):
        return self._in_features


if __name__ == "__main__":
    key = jax.random.PRNGKey(0)
    k_param, k_input = jax.random.split(key)

    model = ResNet50FcJAX(k_param, normalize=True)
    # Input image in [0, 1], NCHW, small: batch=2, 3 channels, 64x64 spatial.
    x = jax.random.uniform(k_input, (2, 3, 64, 64), dtype=jnp.float32)

    feats = model.forward(x)
    feats = jax.block_until_ready(feats)

    assert feats.shape == (2, 2048), feats.shape
    assert feats.dtype == jnp.float32
    assert bool(jnp.all(jnp.isfinite(feats)))
    assert model.output_num() == 2048
    print("KERNEL_OK")
</pallas_src>

<mosaic_0001>
module attributes {stable_mosaic.version = 11 : i64} {
  func.func @_normalize_kernel(%arg0: i32, %arg1: memref<6x4096xf32, #tpu.memory_space<vmem>>, %arg2: memref<6x1xf32, #tpu.memory_space<vmem>>, %arg3: memref<6x1xf32, #tpu.memory_space<vmem>>, %arg4: memref<6x4096xf32, #tpu.memory_space<vmem>>) attributes {dimension_semantics = [#tpu.dimension_semantics<arbitrary>], iteration_bounds = array<i64: 1>, scalar_prefetch = 0 : i64, scratch_operands = 0 : i64, tpu.core_type = #tpu.core_type<tc>, window_params = [{pipeline_mode = #tpu.pipeline_mode<synchronous>, transform_indices = @transform_0, window_bounds = array<i64: 6, 4096>}, {pipeline_mode = #tpu.pipeline_mode<synchronous>, transform_indices = @transform_1, window_bounds = array<i64: 6, 1>}, {pipeline_mode = #tpu.pipeline_mode<synchronous>, transform_indices = @transform_2, window_bounds = array<i64: 6, 1>}, {pipeline_mode = #tpu.pipeline_mode<synchronous>, transform_indices = @transform_3, window_bounds = array<i64: 6, 4096>}]} {
    %c0 = arith.constant 0 : index
    %c0_0 = arith.constant 0 : index
    %0 = vector.load %arg1[%c0, %c0_0] : memref<6x4096xf32, #tpu.memory_space<vmem>>, vector<6x4096xf32>
    %c0_1 = arith.constant 0 : index
    %c0_2 = arith.constant 0 : index
    %1 = vector.load %arg2[%c0_1, %c0_2] : memref<6x1xf32, #tpu.memory_space<vmem>>, vector<6x1xf32>
    %2 = vector.broadcast %1 : vector<6x1xf32> to vector<6x4096xf32>
    %3 = arith.subf %0, %2 : vector<6x4096xf32>
    %c0_3 = arith.constant 0 : index
    %c0_4 = arith.constant 0 : index
    %4 = vector.load %arg3[%c0_3, %c0_4] : memref<6x1xf32, #tpu.memory_space<vmem>>, vector<6x1xf32>
    %5 = vector.broadcast %4 : vector<6x1xf32> to vector<6x4096xf32>
    %6 = arith.mulf %3, %5 : vector<6x4096xf32>
    %c0_5 = arith.constant 0 : index
    %c0_6 = arith.constant 0 : index
    %7 = vector.load %arg4[%c0_5, %c0_6] : memref<6x4096xf32, #tpu.memory_space<vmem>>, vector<6x4096xf32>
    tpu.vector_store %arg4[%c0_5, %c0_6], %6 {strides = array<i32>} : memref<6x4096xf32, #tpu.memory_space<vmem>>, vector<6x4096xf32>,
    return
  }
  func.func @transform_0(%arg0: i32) -> (i32, i32) {
    %c0_i32 = arith.constant 0 : i32
    %c0_i32_0 = arith.constant 0 : i32
    %c0_i32_1 = arith.constant 0 : i32
    return %c0_i32, %c0_i32_0 : i32, i32
  }
  func.func @transform_1(%arg0: i32) -> (i32, i32) {
    %c0_i32 = arith.constant 0 : i32
    %c0_i32_0 = arith.constant 0 : i32
    %c0_i32_1 = arith.constant 0 : i32
    return %c0_i32, %c0_i32_0 : i32, i32
  }
  func.func @transform_2(%arg0: i32) -> (i32, i32) {
    %c0_i32 = arith.constant 0 : i32
    %c0_i32_0 = arith.constant 0 : i32
    %c0_i32_1 = arith.constant 0 : i32
    return %c0_i32, %c0_i32_0 : i32, i32
  }
  func.func @transform_3(%arg0: i32) -> (i32, i32) {
    %c0_i32 = arith.constant 0 : i32
    %c0_i32_0 = arith.constant 0 : i32
    %c0_i32_1 = arith.constant 0 : i32
    return %c0_i32, %c0_i32_0 : i32, i32
  }
}

</mosaic_0001>

<llo_original>
// kernel: tpu_custom_call.1
$region0: #{tpu_custom_call.1}
  #allocation0 [shape = 'u32[]', space=smem, size = 0x4, offset = 0x4, fixed_abs, tag = 'smem constant byte address 0x4 - core index']
  #allocation1 [shape = 'u32[144,128]{1,0:T(1,128)}', space=vmem, size = 0x12000, scoped, tag = 'internal scratch']
  %s0 = inlined_call_operand.hbm [shape: f32[6,4096], index: 0, kind: input, shape index: {}]
  %s1 = inlined_call_operand.vmem [shape: f32[6,1], index: 1, kind: input, shape index: {}]
  %s2 = inlined_call_operand.vmem [shape: f32[6,1], index: 2, kind: input, shape index: {}]
  %s3 = inlined_call_operand.hbm [shape: f32[6,4096], index: 3, kind: output, shape index: {}]
  %s4 = sld [smem:[#allocation0]]
  $region26: #{tpu_custom_call.1} parent=0
    _
  %s6 = ssub.s32 1, %s4
  %s7 = scalar_select 0, %s6, %s4
  $region1: #{tpu_custom_call.1} parent=0
    #allocation2 [shape = 'u8[131072]{0}', space=vmem, size = 0x20000, scoped, tag = 'input window, operand 0, single buffered']
    #allocation3 [shape = 's32[1]{0}', space=sflag, size = 0x4, scoped, tag = 'scoped memory for tpu_custom_call.1']
    #allocation4 [shape = 's32[1]{0}', space=sflag, size = 0x4, scoped, tag = 'scoped memory for tpu_custom_call.1']
    #allocation5 [shape = 'u8[131072]{0}', space=vmem, size = 0x20000, scoped, tag = 'output window, operand 0, single buffered']
    %8 = vsyncpa [#allocation3], 0
    %9 = vsyncpa [#allocation4], 0
    // Predicated region
    $region2: #{tpu_custom_call.1} parent=1 // pred_check
      _
    $region3: #{tpu_custom_call.1} parent=1 // pred_check_branch
      %11 = sbr.rel (0) target = $region5
    $region4: #{tpu_custom_call.1} parent=1 // pred_region
      %s13 = ssub.s32 4096, 4096
      %14 = vsyncadd [#allocation3], %s13
      %s16 = sshll.u32 [#allocation2], 4
      %s17 = int_to_ptr.vmem [resolvable:$true] %s16
      %19 = dma.hbm_to_vmem [thread:$0]  %s0, 4096, %s17, [#allocation3]
    $region5: #{tpu_custom_call.1} parent=1 // pred_fallthru
      _
    // Predicated region
    $region6: #{tpu_custom_call.1} parent=1 // pred_check
      _
    $region7: #{tpu_custom_call.1} parent=1 // pred_check_branch
      %21 = sbr.rel (0) target = $region9
    $region8: #{tpu_custom_call.1} parent=1 // pred_region
      _
    $region9: #{tpu_custom_call.1} parent=1 // pred_fallthru
      _
    // Predicated region
    $region10: #{tpu_custom_call.1} parent=1 // pred_check
      _
    $region11: #{tpu_custom_call.1} parent=1 // pred_check_branch
      %23 = sbr.rel (0) target = $region13
    $region12: #{tpu_custom_call.1} parent=1 // pred_region
      _
    $region13: #{tpu_custom_call.1} parent=1 // pred_fallthru
      _
    // Predicated region
    $region14: #{tpu_custom_call.1} parent=1 // pred_check
      _
    $region15: #{tpu_custom_call.1} parent=1 // pred_check_branch
      %25 = sbr.rel (0) target = $region17
    $region16: #{tpu_custom_call.1} parent=1 // pred_region
      %26 = dma.done [#allocation3], 4096
    $region17: #{tpu_custom_call.1} parent=1 // pred_fallthru
      _
    %v27 = vld [vmem:[#allocation2] sm:$0x3f]
    %v28 = vld [vmem:[#allocation2 + $0x8] sm:$0x3f]
    %v29 = vld [vmem:[#allocation2 + $0x10] sm:$0x3f]
    %v30 = vld [vmem:[#allocation2 + $0x18] sm:$0x3f]
    %v31 = vld [vmem:[#allocation2 + $0x20] sm:$0x3f]
    %v32 = vld [vmem:[#allocation2 + $0x28] sm:$0x3f]
    %v33 = vld [vmem:[#allocation2 + $0x30] sm:$0x3f]
    %v34 = vld [vmem:[#allocation2 + $0x38] sm:$0x3f]
    %v35 = vld [vmem:[#allocation2 + $0x40] sm:$0x3f]
    %v36 = vld [vmem:[#allocation2 + $0x48] sm:$0x3f]
    %v37 = vld [vmem:[#allocation2 + $0x50] sm:$0x3f]
    %v38 = vld [vmem:[#allocation2 + $0x58] sm:$0x3f]
    %v39 = vld [vmem:[#allocation2 + $0x60] sm:$0x3f]
    %v40 = vld [vmem:[#allocation2 + $0x68] sm:$0x3f]
    %v41 = vld [vmem:[#allocation2 + $0x70] sm:$0x3f]
    %v42 = vld [vmem:[#allocation2 + $0x78] sm:$0x3f]
    %v43 = vld [vmem:[#allocation2 + $0x80] sm:$0x3f]
    %v44 = vld [vmem:[#allocation2 + $0x88] sm:$0x3f]
    %v45 = vld [vmem:[#allocation2 + $0x90] sm:$0x3f]
    %v46 = vld [vmem:[#allocation2 + $0x98] sm:$0x3f]
    %v47 = vld [vmem:[#allocation2 + $0xa0] sm:$0x3f]
    %v48 = vld [vmem:[#allocation2 + $0xa8] sm:$0x3f]
    %v49 = vld [vmem:[#allocation2 + $0xb0] sm:$0x3f]
    %v50 = vld [vmem:[#allocation2 + $0xb8] sm:$0x3f]
    %v51 = vld [vmem:[#allocation2 + $0xc0] sm:$0x3f]
    %v52 = vld [vmem:[#allocation2 + $0xc8] sm:$0x3f]
    %v53 = vld [vmem:[#allocation2 + $0xd0] sm:$0x3f]
    %v54 = vld [vmem:[#allocation2 + $0xd8] sm:$0x3f]
    %v55 = vld [vmem:[#allocation2 + $0xe0] sm:$0x3f]
    %v56 = vld [vmem:[#allocation2 + $0xe8] sm:$0x3f]
    %v57 = vld [vmem:[#allocation2 + $0xf0] sm:$0x3f]
    %v58 = vld [vmem:[#allocation2 + $0xf8] sm:$0x3f]
    %v59 = vld [vmem:[%s1] sm:$0x3f]
    %61 = vset.pattern.permute.xlu0 0
    %62 = vperm.xlu0 %61, %v59
    %v63 = vpop.permute.xlu0 %62
    %v65 = vsub.f32 %v27, %v63
    %v66 = vsub.f32 %v28, %v63
    %v67 = vsub.f32 %v29, %v63
    %v68 = vsub.f32 %v30, %v63
    %v69 = vsub.f32 %v31, %v63
    %v70 = vsub.f32 %v32, %v63
    %v71 = vsub.f32 %v33, %v63
    %v72 = vsub.f32 %v34, %v63
    %v73 = vsub.f32 %v35, %v63
    %v74 = vsub.f32 %v36, %v63
    %v75 = vsub.f32 %v37, %v63
    %v76 = vsub.f32 %v38, %v63
    %v77 = vsub.f32 %v39, %v63
    %v78 = vsub.f32 %v40, %v63
    %v79 = vsub.f32 %v41, %v63
    %v80 = vsub.f32 %v42, %v63
    %v81 = vsub.f32 %v43, %v63
    %v82 = vsub.f32 %v44, %v63
    %v83 = vsub.f32 %v45, %v63
    %v84 = vsub.f32 %v46, %v63
    %v85 = vsub.f32 %v47, %v63
    %v86 = vsub.f32 %v48, %v63
    %v87 = vsub.f32 %v49, %v63
    %v88 = vsub.f32 %v50, %v63
    %v89 = vsub.f32 %v51, %v63
    %v90 = vsub.f32 %v52, %v63
    %v91 = vsub.f32 %v53, %v63
    %v92 = vsub.f32 %v54, %v63
    %v93 = vsub.f32 %v55, %v63
    %v94 = vsub.f32 %v56, %v63
    %v95 = vsub.f32 %v57, %v63
    %v96 = vsub.f32 %v58, %v63
    %v97 = vld [vmem:[%s2] sm:$0x3f]
    %99 = vset.pattern.permute.xlu0 0
    %100 = vperm.xlu0 %99, %v97
    %v101 = vpop.permute.xlu0 %100
    %v103 = vmul.f32 %v65, %v101
    %v104 = vmul.f32 %v66, %v101
    %v105 = vmul.f32 %v67, %v101
    %v106 = vmul.f32 %v68, %v101
    %v107 = vmul.f32 %v69, %v101
    %v108 = vmul.f32 %v70, %v101
    %v109 = vmul.f32 %v71, %v101
    %v110 = vmul.f32 %v72, %v101
    %v111 = vmul.f32 %v73, %v101
    %v112 = vmul.f32 %v74, %v101
    %v113 = vmul.f32 %v75, %v101
    %v114 = vmul.f32 %v76, %v101
    %v115 = vmul.f32 %v77, %v101
    %v116 = vmul.f32 %v78, %v101
    %v117 = vmul.f32 %v79, %v101
    %v118 = vmul.f32 %v80, %v101
    %v119 = vmul.f32 %v81, %v101
    %v120 = vmul.f32 %v82, %v101
    %v121 = vmul.f32 %v83, %v101
    %v122 = vmul.f32 %v84, %v101
    %v123 = vmul.f32 %v85, %v101
    %v124 = vmul.f32 %v86, %v101
    %v125 = vmul.f32 %v87, %v101
    %v126 = vmul.f32 %v88, %v101
    %v127 = vmul.f32 %v89, %v101
    %v128 = vmul.f32 %v90, %v101
    %v129 = vmul.f32 %v91, %v101
    %v130 = vmul.f32 %v92, %v101
    %v131 = vmul.f32 %v93, %v101
    %v132 = vmul.f32 %v94, %v101
    %v133 = vmul.f32 %v95, %v101
    %v134 = vmul.f32 %v96, %v101
    %135 = vst [vmem:[#allocation5] sm:$0x3f] %v103
    %136 = vst [vmem:[#allocation5 + $0x8] sm:$0x3f] %v104
    %137 = vst [vmem:[#allocation5 + $0x10] sm:$0x3f] %v105
    %138 = vst [vmem:[#allocation5 + $0x18] sm:$0x3f] %v106
    %139 = vst [vmem:[#allocation5 + $0x20] sm:$0x3f] %v107
    %140 = vst [vmem:[#allocation5 + $0x28] sm:$0x3f] %v108
    %141 = vst [vmem:[#allocation5 + $0x30] sm:$0x3f] %v109
    %142 = vst [vmem:[#allocation5 + $0x38] sm:$0x3f] %v110
    %143 = vst [vmem:[#allocation5 + $0x40] sm:$0x3f] %v111
    %144 = vst [vmem:[#allocation5 + $0x48] sm:$0x3f] %v112
    %145 = vst [vmem:[#allocation5 + $0x50] sm:$0x3f] %v113
    %146 = vst [vmem:[#allocation5 + $0x58] sm:$0x3f] %v114
    %147 = vst [vmem:[#allocation5 + $0x60] sm:$0x3f] %v115
    %148 = vst [vmem:[#allocation5 + $0x68] sm:$0x3f] %v116
    %149 = vst [vmem:[#allocation5 + $0x70] sm:$0x3f] %v117
    %150 = vst [vmem:[#allocation5 + $0x78] sm:$0x3f] %v118
    %151 = vst [vmem:[#allocation5 + $0x80] sm:$0x3f] %v119
    %152 = vst [vmem:[#allocation5 + $0x88] sm:$0x3f] %v120
    %153 = vst [vmem:[#allocation5 + $0x90] sm:$0x3f] %v121
    %154 = vst [vmem:[#allocation5 + $0x98] sm:$0x3f] %v122
    %155 = vst [vmem:[#allocation5 + $0xa0] sm:$0x3f] %v123
    %156 = vst [vmem:[#allocation5 + $0xa8] sm:$0x3f] %v124
    %157 = vst [vmem:[#allocation5 + $0xb0] sm:$0x3f] %v125
    %158 = vst [vmem:[#allocation5 + $0xb8] sm:$0x3f] %v126
    %159 = vst [vmem:[#allocation5 + $0xc0] sm:$0x3f] %v127
    %160 = vst [vmem:[#allocation5 + $0xc8] sm:$0x3f] %v128
    %161 = vst [vmem:[#allocation5 + $0xd0] sm:$0x3f] %v129
    %162 = vst [vmem:[#allocation5 + $0xd8] sm:$0x3f] %v130
    %163 = vst [vmem:[#allocation5 + $0xe0] sm:$0x3f] %v131
    %164 = vst [vmem:[#allocation5 + $0xe8] sm:$0x3f] %v132
    %165 = vst [vmem:[#allocation5 + $0xf0] sm:$0x3f] %v133
    %166 = vst [vmem:[#allocation5 + $0xf8] sm:$0x3f] %v134
    // Predicated region
    $region18: #{tpu_custom_call.1} parent=1 // pred_check
      _
    $region19: #{tpu_custom_call.1} parent=1 // pred_check_branch
      %168 = sbr.rel (0) target = $region21
    $region20: #{tpu_custom_call.1} parent=1 // pred_region
      %s170 = ssub.s32 4096, 4096
      %171 = vsyncadd [#allocation4], %s170
      %s173 = sshll.u32 [#allocation5], 4
      %s174 = int_to_ptr.vmem [resolvable:$true] %s173
      %176 = dma.vmem_to_hbm [thread:$0]  %s174, 4096, %s3, [#allocation4]
    $region21: #{tpu_custom_call.1} parent=1 // pred_fallthru
      _
    // Predicated region
    $region22: #{tpu_custom_call.1} parent=1 // pred_check
      _
    $region23: #{tpu_custom_call.1} parent=1 // pred_check_branch
      %178 = sbr.rel (0) target = $region25
    $region24: #{tpu_custom_call.1} parent=1 // pred_region
      %179 = dma.done [#allocation4], 4096
    $region25: #{tpu_custom_call.1} parent=1 // pred_fallthru
      _
    %180 = vsyncpa [#allocation3], 1
    %181 = vsyncpa [#allocation4], 1

</llo_original>
